<compile_context>
chip_gen: v5e
topology: v5e:2x2
jax: 0.10.0
libtpu: 0.0.40
codegen_flags: <defaults>
</compile_context>

<pallas_src>
import functools
from typing import NamedTuple

import jax
import jax.numpy as jnp
from jax.experimental import pallas as pl
from jax.experimental.pallas import tpu as pltpu


def _round_up(x, m):
    return (x + m - 1) // m * m


class GeneratorParams(NamedTuple):
    """Pre-padded projection parameters (padded ONCE at init, not per forward)."""
    w: jax.Array   # [D, Vp]  pre-transposed nn.Linear weight, vocab padded to tn
    b: jax.Array   # [1, Vp]  float32 bias; padded columns hold -1e30
    vocab: int     # original (unpadded) vocab size V
    tn: int        # vocab tile width used for padding / kernel grid


def pad_generator_params(w, b, *, tn=None):
    """One-time vocab-padding of the projection params (hoisted out of forward).

    w: [D, V] pre-transposed nn.Linear weight; b: [V] bias.
    Padded vocab columns get a -1e30 bias so they never affect the running max
    or the exp-sum of the log-softmax.
    """
    D, V = w.shape
    if tn is None:
        # Lane-dense, 256-aligned vocab tiles feed the 2x256x256 MXU on v6e/v7x
        # (128-multiples are enough on v5e).  Raise toward 1024-2048 for big vocab.
        tn = min(1024, _round_up(V, 256))
    tn = _round_up(tn, 128)
    Vp = _round_up(V, tn)
    if Vp != V:
        w = jnp.pad(w, ((0, 0), (0, Vp - V)))
        b = jnp.pad(b, (0, Vp - V), constant_values=-1e30)
    b = jnp.reshape(b, (1, Vp)).astype(jnp.float32)
    return GeneratorParams(w=w, b=b, vocab=int(V), tn=int(tn))


def _generator_kernel(x_ref, w_ref, b_ref, o_ref, m_ref, l_ref, *, num_vocab_tiles):
    # x_ref: [TM, D]   row tile (same block for every vocab step -> stays resident)
    # w_ref: [D, TN]   vocab slice of the pre-transposed weight (streamed from HBM)
    # b_ref: [1, TN]   vocab slice of the f32 bias
    # o_ref: [TM, Vp]  OUTPUT-RESIDENT row block (same block for every vocab step)
    # m_ref: [TM, 1]   f32 running max               (VMEM scratch)
    # l_ref: [TM, 1]   f32 running rescaled exp-sum  (VMEM scratch)
    j = pl.program_id(1)
    tn = w_ref.shape[1]

    @pl.when(j == 0)
    def _init():
        m_ref[...] = jnp.full_like(m_ref, -jnp.inf)
        l_ref[...] = jnp.zeros_like(l_ref)

    # MXU matmul (bf16/f32 inputs go straight in); accumulate + bias add in f32.
    logits = jnp.dot(x_ref[...], w_ref[...], preferred_element_type=jnp.float32)
    logits = logits + b_ref[...]

    # Online (flash-style) statistics in f32 — spread across vocab steps so the
    # XLU/EUP work hides under the next step's MXU matmul and W DMA.
    m_prev = m_ref[...]
    m_new = jnp.maximum(m_prev, jnp.max(logits, axis=-1, keepdims=True))
    alpha = jnp.exp(m_prev - m_new)          # == 0 on the first step (m_prev = -inf)
    l_ref[...] = alpha * l_ref[...] + jnp.sum(jnp.exp(logits - m_new),
                                              axis=-1, keepdims=True)
    m_ref[...] = m_new

    start = pl.multiple_of(j * tn, 128)      # lane-aligned, lane-dense stores

    @pl.when(j < num_vocab_tiles - 1)
    def _stash():
        # Not the last vocab tile yet: stash raw logits into the resident output
        # block; they get normalized tile-by-tile in the finalize below.
        o_ref[:, pl.ds(start, tn)] = logits.astype(o_ref.dtype)

    @pl.when(j == num_vocab_tiles - 1)
    def _finalize():
        # Full-row statistics are ready: log_softmax = logits - (m + log(l)).
        lse = m_ref[...] + jnp.log(l_ref[...])                     # [TM, 1] f32

        # Last tile: normalize directly from the fresh f32 logits (no out_dtype
        # round-trip for this tile, and no wasted raw store).
        o_ref[:, pl.ds(start, tn)] = (logits - lse).astype(o_ref.dtype)

        # Previous tiles: cheap tile-wise subtract — no (TM, Vp) f32 temps.
        def body(t, carry):
            s = pl.multiple_of(t * tn, 128)
            tile = o_ref[:, pl.ds(s, tn)].astype(jnp.float32)
            o_ref[:, pl.ds(s, tn)] = (tile - lse).astype(o_ref.dtype)
            return carry

        n_prev = num_vocab_tiles - 1
        if n_prev > 0:                         # static (trace-time) check
            jax.lax.fori_loop(0, n_prev, body, 0, unroll=n_prev <= 8)


def _maybe_buffered_spec(block_shape, index_map, buffering):
    if buffering is None:
        return pl.BlockSpec(block_shape, index_map)
    return pl.BlockSpec(block_shape, index_map, pipeline_mode=pl.Buffered(buffering))


def generator_forward(x, params, *, tm=None, out_dtype=None, vmem_limit_bytes=None,
                      w_buffering=None, out_buffering=None):
    """log_softmax(x @ W + b, axis=-1)  ==  Generator.forward for x: [B, d_model].

    `params` comes from `pad_generator_params` (weight/bias padded once, outside
    the per-call path).  Returns [B, vocab] log-probabilities in `out_dtype`
    (default x.dtype; keep f32 for exact finalize precision).
    """
    w, b, V, tn = params
    B, D = x.shape
    Vp = w.shape[1]
    assert w.shape[0] == D and Vp % tn == 0
    out_dtype = jnp.dtype(out_dtype or x.dtype)

    # ---- row-tile selection -------------------------------------------------
    # W is re-streamed from HBM once per row tile, so arithmetic intensity is
    # ~tm FLOPs per weight byte: push tm toward 256 (compute-bound roofline) for
    # large batch, but keep >= 2 row tiles when B >= 16 so the v7x megacore's
    # second TensorCore has work on the "parallel" row axis.
    if tm is None:
        b8 = _round_up(B, 8)
        if B >= 16:
            tm = min(256, _round_up(-(-b8 // 2), 8))
        else:
            tm = b8
    tm = max(8, _round_up(tm, 8))

    Bp = _round_up(B, tm)
    if Bp != B:
        x = jnp.pad(x, ((0, Bp - B), (0, 0)))

    num_row_tiles = Bp // tm
    num_vocab_tiles = Vp // tn
    grid = (num_row_tiles, num_vocab_tiles)

    # VMEM budget per row tile (bytes):
    #   resident out block : tm * Vp * out_itemsize   (x2 unless out_buffering=1)
    #   W stream buffers   : 2 * D * tn * w_itemsize  (x buffering)
    #   x tile             : tm * D * x_itemsize
    #   m/l scratch        : 2 * tm * 4
    # Keep well under the scoped limit (v7x: 64 MiB physical / 32 MiB default
    # scoped).  For production vocab sizes pass vmem_limit_bytes explicitly,
    # use out_buffering=1, bf16 out_dtype, or shrink tm.
    cost = pl.CostEstimate(
        flops=2 * Bp * D * Vp,
        transcendentals=Bp * Vp,                      # one exp per logit
        bytes_accessed=(Bp * D * x.dtype.itemsize
                        + num_row_tiles * (w.size * w.dtype.itemsize
                                           + b.size * b.dtype.itemsize)
                        + Bp * Vp * out_dtype.itemsize),
    )

    kernel = functools.partial(_generator_kernel, num_vocab_tiles=num_vocab_tiles)

    out = pl.pallas_call(
        kernel,
        out_shape=jax.ShapeDtypeStruct((Bp, Vp), out_dtype),
        grid_spec=pltpu.PrefetchScalarGridSpec(
            num_scalar_prefetch=0,
            grid=grid,
            in_specs=[
                pl.BlockSpec((tm, D), lambda i, j: (i, 0)),            # x row tile
                _maybe_buffered_spec((D, tn), lambda i, j: (0, j),     # W vocab slice
                                     w_buffering),
                pl.BlockSpec((1, tn), lambda i, j: (0, j)),            # bias slice
            ],
            # Output-resident row block across the vocab (reduction) axis.
            out_specs=_maybe_buffered_spec((tm, Vp), lambda i, j: (i, 0),
                                           out_buffering),
            scratch_shapes=[
                pltpu.VMEM((tm, 1), jnp.float32),   # running max
                pltpu.VMEM((tm, 1), jnp.float32),   # running rescaled exp-sum
            ],
        ),
        compiler_params=pltpu.CompilerParams(
            dimension_semantics=("parallel", "arbitrary"),
            vmem_limit_bytes=vmem_limit_bytes,
        ),
        cost_estimate=cost,
    )(x, w, b)

    return out[:B, :V]


if __name__ == "__main__":
    key = jax.random.PRNGKey(0)
    k = jax.random.split(key, 9)

    def make_linear(kw, kb, d_model, vocab):
        # nn.Linear(d_model, vocab): weight [vocab, d_model] stored pre-transposed
        # as [d_model, vocab], bias [vocab]; U(-1/sqrt(d_model), 1/sqrt(d_model)).
        bound = 1.0 / (d_model ** 0.5)
        w = jax.random.uniform(kw, (d_model, vocab), jnp.float32, -bound, bound)
        b = jax.random.uniform(kb, (vocab,), jnp.float32, -bound, bound)
        return w, b

    def check(x, w, b, params, **kw):
        out = jax.block_until_ready(generator_forward(x, params, **kw))
        ref = jax.nn.log_softmax(x @ w + b, axis=1)
        assert out.shape == ref.shape
        assert jnp.allclose(out, ref, atol=1e-4, rtol=1e-4), \
            f"mismatch vs reference: max abs err {jnp.max(jnp.abs(out - ref))}"

    # Case 1: padding on both axes, 2 vocab tiles (online path + ragged last tile).
    d1, v1, n1 = 32, 200, 10
    w1, bias1 = make_linear(k[0], k[1], d1, v1)
    p1 = pad_generator_params(w1, bias1, tn=128)          # Vp=256, 2 vocab tiles
    x1 = jax.random.normal(k[2], (n1, d1), jnp.float32)
    check(x1, w1, bias1, p1)

    # Case 2: default tiles, B>=16 -> 2 row tiles ("parallel" axis), padded vocab.
    d2, v2, n2 = 64, 384, 24
    w2, bias2 = make_linear(k[3], k[4], d2, v2)
    p2 = pad_generator_params(w2, bias2)                  # tn=512, Vp=512
    x2 = jax.random.normal(k[5], (n2, d2), jnp.float32)
    check(x2, w2, bias2, p2)

    # Case 3: exact-fit shapes, 4 vocab tiles, explicit small row tile.
    d3, v3, n3 = 32, 512, 16
    w3, bias3 = make_linear(k[6], k[7], d3, v3)
    p3 = pad_generator_params(w3, bias3, tn=128)          # Vp=512, 4 vocab tiles
    x3 = jax.random.normal(k[8], (n3, d3), jnp.float32)
    check(x3, w3, bias3, p3, tm=8)

    print("KERNEL_OK")
</pallas_src>

<mosaic_0001>
module attributes {stable_mosaic.version = 11 : i64} {
  func.func @_generator_kernel(%arg0: i32, %arg1: i32, %arg2: memref<16x32xf32, #tpu.memory_space<vmem>>, %arg3: memref<32x128xf32, #tpu.memory_space<vmem>>, %arg4: memref<1x128xf32, #tpu.memory_space<vmem>>, %arg5: memref<16x256xf32, #tpu.memory_space<vmem>>, %arg6: memref<16x1xf32, #tpu.memory_space<vmem>>, %arg7: memref<16x1xf32, #tpu.memory_space<vmem>>) attributes {dimension_semantics = [#tpu.dimension_semantics<parallel>, #tpu.dimension_semantics<arbitrary>], iteration_bounds = array<i64: 1, 2>, scalar_prefetch = 0 : i64, scratch_operands = 2 : i64, tpu.core_type = #tpu.core_type<tc>, window_params = [{transform_indices = @transform_0, window_bounds = array<i64: 16, 32>}, {transform_indices = @transform_1, window_bounds = array<i64: 32, 128>}, {transform_indices = @transform_2, window_bounds = array<i64: 1, 128>}, {transform_indices = @transform_3, window_bounds = array<i64: 16, 256>}]} {
    %c0_i32 = arith.constant 0 : i32
    %0 = arith.cmpi eq, %arg1, %c0_i32 : i32
    %1 = arith.extui %0 : i1 to i32
    %c0_i32_0 = arith.constant 0 : i32
    %2 = arith.cmpi ne, %1, %c0_i32_0 : i32
    scf.if %2 {
      %cst_19 = arith.constant 0xFF800000 : f32
      %33 = vector.broadcast %cst_19 : f32 to vector<16x1xf32>
      %c0_20 = arith.constant 0 : index
      %c0_21 = arith.constant 0 : index
      %34 = vector.load %arg6[%c0_20, %c0_21] : memref<16x1xf32, #tpu.memory_space<vmem>>, vector<16x1xf32>
      tpu.vector_store %arg6[%c0_20, %c0_21], %33 {strides = array<i32>} : memref<16x1xf32, #tpu.memory_space<vmem>>, vector<16x1xf32>,
      %cst_22 = arith.constant 0.000000e+00 : f32
      %35 = vector.broadcast %cst_22 : f32 to vector<16x1xf32>
      %c0_23 = arith.constant 0 : index
      %c0_24 = arith.constant 0 : index
      %36 = vector.load %arg7[%c0_23, %c0_24] : memref<16x1xf32, #tpu.memory_space<vmem>>, vector<16x1xf32>
      tpu.vector_store %arg7[%c0_23, %c0_24], %35 {strides = array<i32>} : memref<16x1xf32, #tpu.memory_space<vmem>>, vector<16x1xf32>,
    } else {
    }
    %c0 = arith.constant 0 : index
    %c0_1 = arith.constant 0 : index
    %3 = vector.load %arg2[%c0, %c0_1] : memref<16x32xf32, #tpu.memory_space<vmem>>, vector<16x32xf32>
    %c0_2 = arith.constant 0 : index
    %c0_3 = arith.constant 0 : index
    %4 = vector.load %arg3[%c0_2, %c0_3] : memref<32x128xf32, #tpu.memory_space<vmem>>, vector<32x128xf32>
    %cst = arith.constant dense<0.000000e+00> : vector<16x128xf32>
    %5 = tpu.matmul %3, %4, %cst {dimension_numbers = #tpu.dot_dimension_numbers<[1], [0], [0], [1], [0, 0, 1, 1], [], []>} : vector<16x32xf32>, vector<32x128xf32>, vector<16x128xf32> -> vector<16x128xf32>
    %c0_4 = arith.constant 0 : index
    %c0_5 = arith.constant 0 : index
    %6 = vector.load %arg4[%c0_4, %c0_5] : memref<1x128xf32, #tpu.memory_space<vmem>>, vector<1x128xf32>
    %7 = vector.broadcast %6 : vector<1x128xf32> to vector<16x128xf32>
    %8 = arith.addf %5, %7 : vector<16x128xf32>
    %c0_6 = arith.constant 0 : index
    %c0_7 = arith.constant 0 : index
    %9 = vector.load %arg6[%c0_6, %c0_7] : memref<16x1xf32, #tpu.memory_space<vmem>>, vector<16x1xf32>
    %cst_8 = arith.constant dense<0xFF800000> : vector<16xf32>
    %10 = vector.multi_reduction <maximumf>, %8, %cst_8 [1] : vector<16x128xf32> to vector<16xf32>
    %11 = vector.shape_cast %10 : vector<16xf32> to vector<16x1xf32>
    %12 = arith.maximumf %9, %11 : vector<16x1xf32>
    %13 = arith.subf %9, %12 : vector<16x1xf32>
    %14 = math.exp %13 : vector<16x1xf32>
    %c0_9 = arith.constant 0 : index
    %c0_10 = arith.constant 0 : index
    %15 = vector.load %arg7[%c0_9, %c0_10] : memref<16x1xf32, #tpu.memory_space<vmem>>, vector<16x1xf32>
    %16 = arith.mulf %14, %15 : vector<16x1xf32>
    %17 = vector.broadcast %12 : vector<16x1xf32> to vector<16x128xf32>
    %18 = arith.subf %8, %17 : vector<16x128xf32>
    %19 = math.exp %18 : vector<16x128xf32>
    %cst_11 = arith.constant dense<0.000000e+00> : vector<16xf32>
    %20 = vector.multi_reduction <add>, %19, %cst_11 [1] : vector<16x128xf32> to vector<16xf32>
    %21 = vector.shape_cast %20 : vector<16xf32> to vector<16x1xf32>
    %22 = arith.addf %16, %21 : vector<16x1xf32>
    %c0_12 = arith.constant 0 : index
    %c0_13 = arith.constant 0 : index
    %23 = vector.load %arg7[%c0_12, %c0_13] : memref<16x1xf32, #tpu.memory_space<vmem>>, vector<16x1xf32>
    tpu.vector_store %arg7[%c0_12, %c0_13], %22 {strides = array<i32>} : memref<16x1xf32, #tpu.memory_space<vmem>>, vector<16x1xf32>,
    %c0_14 = arith.constant 0 : index
    %c0_15 = arith.constant 0 : index
    %24 = vector.load %arg6[%c0_14, %c0_15] : memref<16x1xf32, #tpu.memory_space<vmem>>, vector<16x1xf32>
    tpu.vector_store %arg6[%c0_14, %c0_15], %12 {strides = array<i32>} : memref<16x1xf32, #tpu.memory_space<vmem>>, vector<16x1xf32>,
    %c128_i32 = arith.constant 128 : i32
    %25 = arith.muli %arg1, %c128_i32 : i32
    %26 = tpu.assume_multiple %25, 128 : i32
    %c1_i32 = arith.constant 1 : i32
    %27 = arith.cmpi slt, %arg1, %c1_i32 : i32
    %28 = arith.extui %27 : i1 to i32
    %c0_i32_16 = arith.constant 0 : i32
    %29 = arith.cmpi ne, %28, %c0_i32_16 : i32
    scf.if %29 {
      %c0_19 = arith.constant 0 : index
      %33 = arith.index_cast %26 : i32 to index
      %34 = vector.load %arg5[%c0_19, %33] : memref<16x256xf32, #tpu.memory_space<vmem>>, vector<16x128xf32>
      tpu.vector_store %arg5[%c0_19, %33], %8 {strides = array<i32>} : memref<16x256xf32, #tpu.memory_space<vmem>>, vector<16x128xf32>,
    } else {
    }
    %c1_i32_17 = arith.constant 1 : i32
    %30 = arith.cmpi eq, %arg1, %c1_i32_17 : i32
    %31 = arith.extui %30 : i1 to i32
    %c0_i32_18 = arith.constant 0 : i32
    %32 = arith.cmpi ne, %31, %c0_i32_18 : i32
    scf.if %32 {
      %c0_19 = arith.constant 0 : index
      %c0_20 = arith.constant 0 : index
      %33 = vector.load %arg6[%c0_19, %c0_20] : memref<16x1xf32, #tpu.memory_space<vmem>>, vector<16x1xf32>
      %c0_21 = arith.constant 0 : index
      %c0_22 = arith.constant 0 : index
      %34 = vector.load %arg7[%c0_21, %c0_22] : memref<16x1xf32, #tpu.memory_space<vmem>>, vector<16x1xf32>
      %35 = math.log %34 : vector<16x1xf32>
      %36 = arith.addf %33, %35 : vector<16x1xf32>
      %37 = vector.broadcast %36 : vector<16x1xf32> to vector<16x128xf32>
      %38 = arith.subf %8, %37 : vector<16x128xf32>
      %c0_23 = arith.constant 0 : index
      %39 = arith.index_cast %26 : i32 to index
      %40 = vector.load %arg5[%c0_23, %39] : memref<16x256xf32, #tpu.memory_space<vmem>>, vector<16x128xf32>
      tpu.vector_store %arg5[%c0_23, %39], %38 {strides = array<i32>} : memref<16x256xf32, #tpu.memory_space<vmem>>, vector<16x128xf32>,
      %c0_i32_24 = arith.constant 0 : i32
      %c128_i32_25 = arith.constant 128 : i32
      %41 = arith.muli %c0_i32_24, %c128_i32_25 : i32
      %42 = tpu.assume_multiple %41, 128 : i32
      %c0_26 = arith.constant 0 : index
      %43 = arith.index_cast %42 : i32 to index
      %44 = vector.load %arg5[%c0_26, %43] : memref<16x256xf32, #tpu.memory_space<vmem>>, vector<16x128xf32>
      %45 = vector.broadcast %36 : vector<16x1xf32> to vector<16x128xf32>
      %46 = arith.subf %44, %45 : vector<16x128xf32>
      %c0_27 = arith.constant 0 : index
      %47 = arith.index_cast %42 : i32 to index
      %48 = vector.load %arg5[%c0_27, %47] : memref<16x256xf32, #tpu.memory_space<vmem>>, vector<16x128xf32>
      tpu.vector_store %arg5[%c0_27, %47], %46 {strides = array<i32>} : memref<16x256xf32, #tpu.memory_space<vmem>>, vector<16x128xf32>,
      %c1_i32_28 = arith.constant 1 : i32
    } else {
    }
    return
  }
  func.func @transform_0(%arg0: i32, %arg1: i32) -> (i32, i32) {
    %c0_i32 = arith.constant 0 : i32
    %c0_i32_0 = arith.constant 0 : i32
    return %arg0, %c0_i32 : i32, i32
  }
  func.func @transform_1(%arg0: i32, %arg1: i32) -> (i32, i32) {
    %c0_i32 = arith.constant 0 : i32
    %c0_i32_0 = arith.constant 0 : i32
    return %c0_i32, %arg1 : i32, i32
  }
  func.func @transform_2(%arg0: i32, %arg1: i32) -> (i32, i32) {
    %c0_i32 = arith.constant 0 : i32
    %c0_i32_0 = arith.constant 0 : i32
    return %c0_i32, %arg1 : i32, i32
  }
  func.func @transform_3(%arg0: i32, %arg1: i32) -> (i32, i32) {
    %c0_i32 = arith.constant 0 : i32
    %c0_i32_0 = arith.constant 0 : i32
    return %arg0, %c0_i32 : i32, i32
  }
}

</mosaic_0001>

<llo_original>
// kernel: tpu_custom_call.1
$region0: #{tpu_custom_call.1}
  #allocation0 [shape = 'u32[]', space=smem, size = 0x4, offset = 0x4, fixed_abs, tag = 'smem constant byte address 0x4 - core index']
  #allocation1 [shape = 'u32[72,128]{1,0:T(1,128)}', space=vmem, size = 0x9000, scoped, tag = 'internal scratch']
  #allocation2 [shape = 'f32[16,1]{1,0:T(8,128)}', space=vmem, size = 0x2000, scoped, tag = 'scratch operand']
  #allocation3 [shape = 'f32[16,1]{1,0:T(8,128)}', space=vmem, size = 0x2000, scoped, tag = 'scratch operand']
  %s0 = inlined_call_operand.hbm [shape: f32[16,32], index: 0, kind: input, shape index: {}]
  %s1 = inlined_call_operand.hbm [shape: f32[32,256], index: 1, kind: input, shape index: {}]
  %s2 = inlined_call_operand.hbm [shape: f32[1,256], index: 2, kind: input, shape index: {}]
  %s3 = inlined_call_operand.hbm [shape: f32[16,256], index: 3, kind: output, shape index: {}]
  %s4 = sld [smem:[#allocation0]]
  $region69: #{tpu_custom_call.1} parent=0
    _
  %s6 = ssub.s32 1, %s4
  %s7 = scalar_select 0, %s6, %s4
  $region1: #{tpu_custom_call.1} parent=0
    #allocation4 [shape = 'u8[8192]{0}', space=vmem, size = 0x2000, scoped, tag = 'input window, operand 0, single buffered']
    #allocation5 [shape = 's32[2]{0}', space=sflag, size = 0x8, scoped, tag = 'scoped memory for tpu_custom_call.1']
    #allocation6 [shape = 's32[2]{0}', space=sflag, size = 0x8, scoped, tag = 'scoped memory for tpu_custom_call.1']
    #allocation7 [shape = 'u8[32768]{0}', space=vmem, size = 0x8000, scoped, tag = 'input window, operand 1']
    #allocation8 [shape = 's32[2]{0}', space=sflag, size = 0x8, scoped, tag = 'scoped memory for tpu_custom_call.1']
    #allocation9 [shape = 'u8[1024]{0}', space=vmem, size = 0x400, scoped, tag = 'input window, operand 2']
    #allocation10 [shape = 'u8[16384]{0}', space=vmem, size = 0x4000, scoped, tag = 'output window, operand 0, single buffered']
    %8 = vsyncpa [#allocation5], 0
    %9 = vsyncpa [#allocation8], 0
    %s10 = scalar_lea.sflag [#allocation8], 1
    %11 = vsyncpa %s10, 0
    %12 = vsyncpa [#allocation6], 0
    loop: start=0, step=1, limit=4
    $region2: #{tpu_custom_call.1} parent=1 // loop_pre_header
      _
    $region3: #{tpu_custom_call.1} parent=1 // loop_header
      %s14 = sphi 0, %s18
      %p15 = scmp.ge.s32.totalorder %s14, 4
      %s21 = sphi 0, %s33
      %s22 = sphi 0, %s29
      %s23 = sphi 0, %s21
      %s24 = sphi 0, %s22
      %s25 = sphi 0, %s23
      %s26 = sphi 0, %s24
      %s36 = sphi 0, %s38
      %s39 = sphi 0, %s36
      %s40 = sphi 0, %s39
      %s56 = sphi 0, %s40
      %s62 = sphi 0, %s64
      %s65 = sphi 0, %s62
      %s66 = sphi 0, %s65
      %s82 = sphi 0, %s66
      %s88 = sphi 0, %s90
      %s91 = sphi 0, %s88
      %s92 = sphi 0, %s91
      %s108 = sphi 0, %s92
      %s114 = sphi 0, %s116
      %s117 = sphi 0, %s114
      %s118 = sphi 0, %s117
      %s134 = sphi 0, %s118
    $region4: #{tpu_custom_call.1} parent=1 // loop_header_branch
      %17 = sbr.rel (%p15) target = $region8
    $region5: #{tpu_custom_call.1} parent=1 // loop_body
      %s19 = ssub.s32 %s14, 1
      %s20 = ssub.s32 %s14, 2
      %s27 = sadd.s32 1, %s22
      %p28 = scmp.ge.s32.totalorder %s27, 2
      %s29 = scalar_select %p28, 0, %s27
      %s30 = sadd.s32 1, %s21
      %s31 = scalar_select %p28, %s30, %s21
      %p32 = scmp.ge.s32.totalorder %s31, 1
      %s33 = scalar_select %p32, 0, %s31
      %s34 = ssub.s32 %s21, %s33
      %p35 = scmp.eq.s32.totalorder %s34, 0
      %s37 = sadd.s32 %s36, 1
      %s38 = scalar_select %p35, %s36, %s37
      %p41 = pneg %p35
      %p42 = scmp.eq.s32.totalorder %s14, 1
      %p43 = por %p41, %p42
      %p44 = scmp.ne.s32.totalorder %s36, %s39
      %p45 = scmp.eq.s32.totalorder %s14, 0
      %p46 = por %p44, %p45
      %p47 = scmp.ne.s32.totalorder %s36, %s39
      %p48 = scmp.eq.s32.totalorder %s19, 1
      %p49 = por %p47, %p48
      %p50 = scmp.ne.s32.totalorder %s39, %s40
      %p51 = scmp.eq.s32.totalorder %s19, 0
      %p52 = por %p50, %p51
      %p53 = scmp.ne.s32.totalorder %s39, %s40
      %p54 = scmp.eq.s32.totalorder %s20, 1
      %p55 = por %p53, %p54
      %p57 = scmp.ne.s32.totalorder %s40, %s56
      %p58 = scmp.eq.s32.totalorder %s20, 0
      %p59 = por %p57, %p58
      %s60 = ssub.s32 %s22, %s29
      %p61 = scmp.eq.s32.totalorder %s60, 0
      %s63 = sadd.s32 %s62, 1
      %s64 = scalar_select %p61, %s62, %s63
      %p67 = pneg %p61
      %p68 = scmp.eq.s32.totalorder %s14, 1
      %p69 = por %p67, %p68
      %p70 = scmp.ne.s32.totalorder %s62, %s65
      %p71 = scmp.eq.s32.totalorder %s14, 0
      %p72 = por %p70, %p71
      %p73 = scmp.ne.s32.totalorder %s62, %s65
      %p74 = scmp.eq.s32.totalorder %s19, 1
      %p75 = por %p73, %p74
      %p76 = scmp.ne.s32.totalorder %s65, %s66
      %p77 = scmp.eq.s32.totalorder %s19, 0
      %p78 = por %p76, %p77
      %p79 = scmp.ne.s32.totalorder %s65, %s66
      %p80 = scmp.eq.s32.totalorder %s20, 1
      %p81 = por %p79, %p80
      %p83 = scmp.ne.s32.totalorder %s66, %s82
      %p84 = scmp.eq.s32.totalorder %s20, 0
      %p85 = por %p83, %p84
      %s86 = ssub.s32 %s22, %s29
      %p87 = scmp.eq.s32.totalorder %s86, 0
      %s89 = sadd.s32 %s88, 1
      %s90 = scalar_select %p87, %s88, %s89
      %p93 = pneg %p87
      %p94 = scmp.eq.s32.totalorder %s14, 1
      %p95 = por %p93, %p94
      %p96 = scmp.ne.s32.totalorder %s88, %s91
      %p97 = scmp.eq.s32.totalorder %s14, 0
      %p98 = por %p96, %p97
      %p99 = scmp.ne.s32.totalorder %s88, %s91
      %p100 = scmp.eq.s32.totalorder %s19, 1
      %p101 = por %p99, %p100
      %p102 = scmp.ne.s32.totalorder %s91, %s92
      %p103 = scmp.eq.s32.totalorder %s19, 0
      %p104 = por %p102, %p103
      %p105 = scmp.ne.s32.totalorder %s91, %s92
      %p106 = scmp.eq.s32.totalorder %s20, 1
      %p107 = por %p105, %p106
      %p109 = scmp.ne.s32.totalorder %s92, %s108
      %p110 = scmp.eq.s32.totalorder %s20, 0
      %p111 = por %p109, %p110
      %s112 = ssub.s32 %s21, %s33
      %p113 = scmp.eq.s32.totalorder %s112, 0
      %s115 = sadd.s32 %s114, 1
      %s116 = scalar_select %p113, %s114, %s115
      %p119 = pneg %p113
      %p120 = scmp.eq.s32.totalorder %s14, 1
      %p121 = por %p119, %p120
      %p122 = scmp.ne.s32.totalorder %s114, %s117
      %p123 = scmp.eq.s32.totalorder %s14, 0
      %p124 = por %p122, %p123
      %p125 = scmp.ne.s32.totalorder %s114, %s117
      %p126 = scmp.eq.s32.totalorder %s19, 1
      %p127 = por %p125, %p126
      %p128 = scmp.ne.s32.totalorder %s117, %s118
      %p129 = scmp.eq.s32.totalorder %s19, 0
      %p130 = por %p128, %p129
      %p131 = scmp.ne.s32.totalorder %s117, %s118
      %p132 = scmp.eq.s32.totalorder %s20, 1
      %p133 = por %p131, %p132
      %p135 = scmp.ne.s32.totalorder %s118, %s134
      %p136 = scmp.eq.s32.totalorder %s20, 0
      %p137 = por %p135, %p136
      %p138 = scmp.le.s32.totalorder 1, %s14
      %p139 = scmp.lt.s32.totalorder %s14, 3
      %p140 = pnand %p138, %p139
      %p141 = pneg %p140
      // Predicated region
      $region9: #{tpu_custom_call.1} parent=5 // pred_check
        _
      $region10: #{tpu_custom_call.1} parent=5 // pred_check_branch
        %143 = sbr.rel (%p140) target = $region12
      $region11: #{tpu_custom_call.1} parent=5 // pred_region
        %s144 = ssub.s32 %s14, 1
        // Predicated region
        $region13: #{tpu_custom_call.1} parent=11 // pred_check
          %p145 = pneg %p52
        $region14: #{tpu_custom_call.1} parent=11 // pred_check_branch
          %147 = sbr.rel (%p145) target = $region16
        $region15: #{tpu_custom_call.1} parent=11 // pred_region
          %s148 = smul.u32 2, %s23
          %150 = vsyncadd [#allocation5], 0
          %s151 = smul.addr %s148, 8
          %s152 = scalar_lea.hbm %s0, %s151
          %s153 = sshll.u32 %s152, 4
          %s154 = int_to_ptr.hbm [resolvable:$true] %s153
          %s155 = sshll.u32 [#allocation4], 4
          %s156 = int_to_ptr.vmem [resolvable:$true] %s155
          %161 = dma.hbm_to_vmem [thread:$0]  %s154, 256, %s156, [#allocation5], 128, 128, 8
        $region16: #{tpu_custom_call.1} parent=11 // pred_fallthru
          _
      $region12: #{tpu_custom_call.1} parent=5 // pred_fallthru
        _
      %p162 = scmp.lt.s32.totalorder %s14, 2
      // Predicated region
      $region17: #{tpu_custom_call.1} parent=5 // pred_check
        %p163 = pneg %p162
      $region18: #{tpu_custom_call.1} parent=5 // pred_check_branch
        %165 = sbr.rel (%p163) target = $region20
      $region19: #{tpu_custom_call.1} parent=5 // pred_region
        // Predicated region
        $region21: #{tpu_custom_call.1} parent=19 // pred_check
          %p166 = pneg %p72
        $region22: #{tpu_custom_call.1} parent=19 // pred_check_branch
          %168 = sbr.rel (%p166) target = $region24
        $region23: #{tpu_custom_call.1} parent=19 // pred_region
          %s169 = sand.u32 %s14, 1
          %s170 = scalar_lea.sflag [#allocation8], %s169
          %s171 = sand.u32 %s62, 1
          %s172 = smul.addr %s171, 32
          %s173 = scalar_lea.vmem [#allocation7], %s172
          %175 = vsyncadd %s170, 0
          %s176 = smul.addr %s22, 8
          %s177 = scalar_lea.hbm %s1, %s176
          %s178 = sshll.u32 %s177, 4
          %s179 = int_to_ptr.hbm [resolvable:$true] %s178
          %s180 = sshll.u32 %s173, 4
          %s181 = int_to_ptr.vmem [resolvable:$true] %s180
          %186 = dma.hbm_to_vmem [thread:$0]  %s179, 512, %s181, %s170, 256, 128, 8
        $region24: #{tpu_custom_call.1} parent=19 // pred_fallthru
          _
        // Predicated region
        $region25: #{tpu_custom_call.1} parent=19 // pred_check
          %p187 = pneg %p98
        $region26: #{tpu_custom_call.1} parent=19 // pred_check_branch
          %189 = sbr.rel (%p187) target = $region28
        $region27: #{tpu_custom_call.1} parent=19 // pred_region
          %s190 = sand.u32 %s14, 1
          %s191 = scalar_lea.sflag [#allocation8], %s190
          %s192 = sand.u32 %s88, 1
          %s193 = scalar_lea.vmem [#allocation9], %s192
          %195 = vsyncadd %s191, 0
          %s196 = scalar_lea.hbm %s2, %s22
          %s198 = sshll.u32 %s196, 4
          %s199 = int_to_ptr.hbm [resolvable:$true] %s198
          %s200 = sshll.u32 %s193, 4
          %s201 = int_to_ptr.vmem [resolvable:$true] %s200
          %203 = dma.hbm_to_vmem [thread:$0]  %s199, 16, %s201, %s191
        $region28: #{tpu_custom_call.1} parent=19 // pred_fallthru
          _
      $region20: #{tpu_custom_call.1} parent=5 // pred_fallthru
        _
      %p204 = scmp.le.s32.totalorder 1, %s14
      %p205 = scmp.lt.s32.totalorder %s14, 3
      %p206 = pnand %p204, %p205
      %p207 = pneg %p206
      // Predicated region
      $region29: #{tpu_custom_call.1} parent=5 // pred_check
        _
      $region30: #{tpu_custom_call.1} parent=5 // pred_check_branch
        %209 = sbr.rel (%p206) target = $region32
      $region31: #{tpu_custom_call.1} parent=5 // pred_region
        %s210 = ssub.s32 %s14, 1
        // Predicated region
        $region33: #{tpu_custom_call.1} parent=31 // pred_check
          %p211 = pneg %p52
        $region34: #{tpu_custom_call.1} parent=31 // pred_check_branch
          %213 = sbr.rel (%p211) target = $region36
        $region35: #{tpu_custom_call.1} parent=31 // pred_region
          %215 = dma.done [#allocation5], 256
        $region36: #{tpu_custom_call.1} parent=31 // pred_fallthru
          _
        %s216 = sand.u32 %s19, 1
        %s217 = scalar_lea.sflag [#allocation8], %s216
        %s218 = sand.u32 %s65, 1
        %s219 = smul.addr %s218, 32
        %s220 = scalar_lea.vmem [#allocation7], %s219
        // Predicated region
        $region37: #{tpu_custom_call.1} parent=31 // pred_check
          %p221 = pneg %p78
        $region38: #{tpu_custom_call.1} parent=31 // pred_check_branch
          %223 = sbr.rel (%p221) target = $region40
        $region39: #{tpu_custom_call.1} parent=31 // pred_region
          %225 = dma.done %s217, 512
        $region40: #{tpu_custom_call.1} parent=31 // pred_fallthru
          _
        %s226 = sand.u32 %s19, 1
        %s227 = scalar_lea.sflag [#allocation8], %s226
        %s228 = sand.u32 %s91, 1
        %s229 = scalar_lea.vmem [#allocation9], %s228
        // Predicated region
        $region41: #{tpu_custom_call.1} parent=31 // pred_check
          %p230 = pneg %p104
        $region42: #{tpu_custom_call.1} parent=31 // pred_check_branch
          %232 = sbr.rel (%p230) target = $region44
        $region43: #{tpu_custom_call.1} parent=31 // pred_region
          %234 = dma.done %s227, 16
        $region44: #{tpu_custom_call.1} parent=31 // pred_fallthru
          _
        %p235 = pneg %p52
        %p236 = pneg %p49
        %s237 = sand.u32 %s19, 1
        %s238 = scalar_lea.sflag [#allocation8], %s237
        %s239 = sand.u32 %s65, 1
        %s240 = smul.addr %s239, 32
        %s241 = scalar_lea.vmem [#allocation7], %s240
        %p242 = pneg %p78
        %p243 = pneg %p75
        %s244 = sand.u32 %s19, 1
        %s245 = scalar_lea.sflag [#allocation8], %s244
        %s246 = sand.u32 %s91, 1
        %s247 = scalar_lea.vmem [#allocation9], %s246
        %p248 = pneg %p104
        %p249 = pneg %p101
        %p250 = pneg %p130
        %p251 = pneg %p127
        %s252 = smul.u32 2, %s23
        %s253 = smul.u32 2, %s23
        %p254 = scmp.eq.s32.totalorder %s24, 0
        // Predicated region
        $region45: #{tpu_custom_call.1} parent=31 // pred_check
          %p255 = pneg %p254
        $region46: #{tpu_custom_call.1} parent=31 // pred_check_branch
          %257 = sbr.rel (%p255) target = $region48
        $region47: #{tpu_custom_call.1} parent=31 // pred_region
          %vm258 = vcmask 7168
          %259 = vst.msk [vmem:[#allocation2] sm:$0xff] %vm258, -inf
          %260 = vst.msk [vmem:[#allocation2 + $0x8] sm:$0xff] %vm258, -inf
          %261 = vst.msk [vmem:[#allocation3] sm:$0xff] %vm258, 0.0
          %262 = vst.msk [vmem:[#allocation3 + $0x8] sm:$0xff] %vm258, 0.0
        $region48: #{tpu_custom_call.1} parent=31 // pred_fallthru
          _
        %v263 = vld [vmem:[#allocation4] sm:$0xff]
        %v264 = vld [vmem:[#allocation4 + $0x8] sm:$0xff]
        %v265 = vld [vmem:[%s220] sm:$0xff]
        %v266 = vld [vmem:[%s220 + $0x8] sm:$0xff]
        %v267 = vld [vmem:[%s220 + $0x10] sm:$0xff]
        %v268 = vld [vmem:[%s220 + $0x18] sm:$0xff]
        %v269 = vld [vmem:[%s229] sm:$0x1]
        %v271 = vperm.slane %v269, 0
        %vm273 = vcmask 261120
        %v275 = vsel %vm273, %v263, 0
        %v278 = vsel %vm273, %v264, 0
        %280 = vmatpush.msra.mxu0 0.0
        %281 = vmatpush.msra.mxu0 0.0
        %282 = vmatpush.msra.mxu0 0.0
        %283 = vmatpush.msra.mxu0 0.0
        %284 = vmatpush.msra.mxu0 0.0
        %285 = vmatpush.msra.mxu0 0.0
        %286 = vmatpush.msra.mxu0 0.0
        %287 = vmatpush.msra.mxu0 0.0
        %288 = vmatpush.msra.mxu0 0.0
        %289 = vmatpush.msra.mxu0 0.0
        %290 = vmatpush.msra.mxu0 0.0
        %291 = vmatpush.msra.mxu0 0.0
        %292 = vmatpush.msra.mxu0 %v268
        %293 = vmatpush.msra.mxu0 %v267
        %294 = vmatpush.msra.mxu0 %v266
        %295 = vmatpush.msra.mxu0 %v265
        %296 = vmatmul.f32.gmra.mxu0 %v275
        %v297 = vpop.f32.mrf.mxu0
        %v298 = vadd.f32 %v271, %v297
        %299 = vmatmul.f32.gmra.mxu0 %v278
        %v300 = vpop.f32.mrf.mxu0
        %v301 = vadd.f32 %v271, %v300
        %302 = vdwg.mxu0
        %v303 = vld [vmem:[#allocation2] sm:$0xff]
        %v304 = vld [vmem:[#allocation2 + $0x8] sm:$0xff]
        %305 = vmax.xlane.f32.xlu0 %v298
        %v306 = vpop.xlane.xlu0 %305
        %307 = vmax.xlane.f32.xlu0 %v301
        %v308 = vpop.xlane.xlu0 %307
        %v309 = vmax.f32 %v303, %v306
        %v310 = vmax.f32 %v304, %v308
        %v311 = vsub.f32 %v303, %v309
        %v312 = vsub.f32 %v304, %v310
        %v313 = vmul.f32 %v311, 1.442695
        %v314 = vpow.pop %v313
        %v315 = vmul.f32 %v312, 1.442695
        %v316 = vpow.pop %v315
        %v317 = vld [vmem:[#allocation3] sm:$0xff]
        %v318 = vld [vmem:[#allocation3 + $0x8] sm:$0xff]
        %v319 = vmul.f32 %v314, %v317
        %v320 = vmul.f32 %v316, %v318
        %322 = vset.pattern.permute.xlu0 0
        %323 = vperm.xlu0 %322, %v309
        %v324 = vpop.permute.xlu0 %323
        %327 = vset.pattern.permute.xlu0 0
        %328 = vperm.xlu0 %327, %v310
        %v329 = vpop.permute.xlu0 %328
        %v331 = vsub.f32 %v298, %v324
        %v332 = vsub.f32 %v301, %v329
        %v333 = vmul.f32 %v331, 1.442695
        %v334 = vpow.pop %v333
        %v335 = vmul.f32 %v332, 1.442695
        %v336 = vpow.pop %v335
        %337 = vadd.xlane.f32.xlu0 %v334
        %v338 = vpop.xlane.xlu0 %337
        %339 = vadd.xlane.f32.xlu0 %v336
        %v340 = vpop.xlane.xlu0 %339
        %v341 = vadd.f32 %v319, %v338
        %v342 = vadd.f32 %v320, %v340
        %vm343 = vcmask 7168
        %344 = vst.msk [vmem:[#allocation3] sm:$0xff] %vm343, %v341
        %345 = vst.msk [vmem:[#allocation3 + $0x8] sm:$0xff] %vm343, %v342
        %346 = vst.msk [vmem:[#allocation2] sm:$0xff] %vm343, %v309
        %347 = vst.msk [vmem:[#allocation2 + $0x8] sm:$0xff] %vm343, %v310
        %s348 = smul.u32 %s24, 128
        %p349 = scmp.lt.s32.totalorder %s24, 1
        // Predicated region
        $region49: #{tpu_custom_call.1} parent=31 // pred_check
          %p350 = pneg %p349
        $region50: #{tpu_custom_call.1} parent=31 // pred_check_branch
          %352 = sbr.rel (%p350) target = $region52
        $region51: #{tpu_custom_call.1} parent=31 // pred_region
          %s353 = sshra.s32 %s348, 7
          %s354 = sand.u32 %s348, 127
          %s355 = smul.addr %s353, 8
          %s356 = scalar_lea.vmem [#allocation10], %s355
          %357 = vst [vmem:[%s356] sm:$0xff] %v298
          %358 = vst [vmem:[%s356 + $0x10] sm:$0xff] %v301
        $region52: #{tpu_custom_call.1} parent=31 // pred_fallthru
          _
        %p359 = scmp.eq.s32.totalorder %s24, 1
        // Predicated region
        $region53: #{tpu_custom_call.1} parent=31 // pred_check
          %p360 = pneg %p359
        $region54: #{tpu_custom_call.1} parent=31 // pred_check_branch
          %362 = sbr.rel (%p360) target = $region56
        $region55: #{tpu_custom_call.1} parent=31 // pred_region
          %v363 = vld [vmem:[#allocation2] sm:$0xff]
          %v364 = vld [vmem:[#allocation2 + $0x8] sm:$0xff]
          %v365 = vld [vmem:[#allocation3] sm:$0xff]
          %v366 = vld [vmem:[#allocation3 + $0x8] sm:$0xff]
          %v367 = vlog2.pop %v365
          %v368 = vmul.f32 %v367, 0.6931472
          %v369 = vlog2.pop %v366
          %v370 = vmul.f32 %v369, 0.6931472
          %v371 = vadd.f32 %v363, %v368
          %v372 = vadd.f32 %v364, %v370
          %374 = vset.pattern.permute.xlu0 0
          %375 = vperm.xlu0 %374, %v371
          %v376 = vpop.permute.xlu0 %375
          %379 = vset.pattern.permute.xlu0 0
          %380 = vperm.xlu0 %379, %v372
          %v381 = vpop.permute.xlu0 %380
          %v383 = vsub.f32 %v298, %v376
          %v384 = vsub.f32 %v301, %v381
          %s385 = sshra.s32 %s348, 7
          %s386 = sand.u32 %s348, 127
          %s387 = smul.addr %s385, 8
          %s388 = scalar_lea.vmem [#allocation10], %s387
          %389 = vst [vmem:[%s388] sm:$0xff] %v383
          %390 = vst [vmem:[%s388 + $0x10] sm:$0xff] %v384
          %v391 = vld [vmem:[#allocation10] sm:$0xff]
          %v392 = vld [vmem:[#allocation10 + $0x10] sm:$0xff]
          %v393 = vsub.f32 %v391, %v376
          %v394 = vsub.f32 %v392, %v381
          %395 = vst [vmem:[#allocation10] sm:$0xff] %v393
          %396 = vst [vmem:[#allocation10 + $0x10] sm:$0xff] %v394
        $region56: #{tpu_custom_call.1} parent=31 // pred_fallthru
          _
        // Predicated region
        $region57: #{tpu_custom_call.1} parent=31 // pred_check
          %p397 = pneg %p127
        $region58: #{tpu_custom_call.1} parent=31 // pred_check_branch
          %399 = sbr.rel (%p397) target = $region60
        $region59: #{tpu_custom_call.1} parent=31 // pred_region
          %s400 = smul.u32 2, %s23
          %402 = vsyncadd [#allocation6], 0
          %s403 = smul.addr %s400, 2
          %s404 = smul.addr %s403, 8
          %s405 = scalar_lea.hbm %s3, %s404
          %s406 = sshll.u32 [#allocation10], 4
          %s407 = int_to_ptr.vmem [resolvable:$true] %s406
          %s408 = sshll.u32 %s405, 4
          %s409 = int_to_ptr.hbm [resolvable:$true] %s408
          %414 = dma.vmem_to_hbm [thread:$0]  %s407, 512, %s409, [#allocation6], 256, 256, 16
        $region60: #{tpu_custom_call.1} parent=31 // pred_fallthru
          _
        // Predicated region
        $region61: #{tpu_custom_call.1} parent=31 // pred_check
          %p415 = pneg %p127
        $region62: #{tpu_custom_call.1} parent=31 // pred_check_branch
          %417 = sbr.rel (%p415) target = $region64
        $region63: #{tpu_custom_call.1} parent=31 // pred_region
          %419 = dma.done [#allocation6], 512
        $region64: #{tpu_custom_call.1} parent=31 // pred_fallthru
          _
      $region32: #{tpu_custom_call.1} parent=5 // pred_fallthru
        _
      %p420 = scmp.le.s32.totalorder 2, %s14
      // Predicated region
      $region65: #{tpu_custom_call.1} parent=5 // pred_check
        %p421 = pneg %p420
      $region66: #{tpu_custom_call.1} parent=5 // pred_check_branch
        %423 = sbr.rel (%p421) target = $region68
      $region67: #{tpu_custom_call.1} parent=5 // pred_region
        %s424 = ssub.s32 %s14, 2
      $region68: #{tpu_custom_call.1} parent=5 // pred_fallthru
        _
    $region6: #{tpu_custom_call.1} parent=1 // loop_footer
      %s18 = sadd.s32 1, %s14
    $region7: #{tpu_custom_call.1} parent=1 // loop_footer_branch
      %13 = sbr.rel target = $region3
    $region8: #{tpu_custom_call.1} parent=1 // loop_exit
      _
    %425 = vsyncpa [#allocation5], 1
    %s426 = scalar_lea.sflag [#allocation5], 1
    %427 = vsyncpa %s426, 1
    %428 = vsyncpa [#allocation8], 1
    %s429 = scalar_lea.sflag [#allocation8], 1
    %430 = vsyncpa %s429, 1
    %431 = vsyncpa [#allocation6], 1
    %s432 = scalar_lea.sflag [#allocation6], 1
    %433 = vsyncpa %s432, 1

</llo_original>
